<compile_context>
chip_gen: v6e
topology: v6e:2x2x1
jax: 0.10.0
libtpu: 0.0.40
codegen_flags: <defaults>
</compile_context>

<pallas_src>
import jax
import jax.numpy as jnp
from jax import lax
from jax.experimental import pallas as pl
from jax.experimental.pallas import tpu as pltpu


_TARGET_TILE_BYTES = 4 * 1024 * 1024   # per streamed input, per grid step (f32)


def _divisors(n):
    ds = set()
    i = 1
    while i * i <= n:
        if n % i == 0:
            ds.add(i)
            ds.add(n // i)
        i += 1
    return sorted(ds)


def _choose_tiles(B, L, block_bytes):
    """Pick (tile_b, tile_l) obeying the (8,128) rule with ~block_bytes input tiles."""
    b_divs = [d for d in _divisors(B) if d % 8 == 0]
    if b_divs:
        cand = [d for d in b_divs if d <= 64]
        tile_b = max(cand) if cand else min(b_divs)
    else:
        tile_b = B                         # full-B block is always layout-legal

    max_l = max(1, block_bytes // (4 * 2 * tile_b))      # L elements per tile
    l_divs = [d for d in _divisors(L) if d % 64 == 0]    # 2*d % 128 == 0
    if not l_divs or L <= max_l:
        tile_l = L                         # full-L block (single inner step)
    else:
        fit = [d for d in l_divs if d <= max_l]
        tile_l = max(fit) if fit else min(l_divs)
    return tile_b, tile_l


def _choose_out_width(w_tile):
    """Narrow lane-dense output width dividing w_tile with <=32 fold chunks."""
    if w_tile % 256 != 0:
        return w_tile
    target = max(256, w_tile // 32)
    d = 256
    while d <= w_tile:
        if w_tile % d == 0 and d >= target:
            return d
        d += 256
    return w_tile


def _vmem_limit_bytes():
    cap = 64 * 1024 * 1024                 # v7x per-core VMEM (worst case)
    try:
        info = pltpu.get_tpu_info()
        cap = int(getattr(info, "vmem_capacity_bytes", cap)) or cap
    except Exception:
        pass
    # 3/4 of physical VMEM: ~48 MiB on v7x, 96 MiB on v5e/v6e.
    return int(min(cap * 3 // 4, 100 * 1024 * 1024))


def _make_kernel(n_chunks, out_w):
    def kernel(dl_ref, yt_ref, yp_ref, out_ref, acc_ref):
        # dl_ref : [TILE_B, 1] int32           -- doc lengths for this B block
        # yt_ref : [TILE_B, W]                 -- y_true, class-interleaved lanes
        # yp_ref : [TILE_B, W]                 -- y_pred, class-interleaved lanes
        # out_ref: [1, TILE_B, OUT_W] f32      -- narrow per-(L_outer, B block) partials
        # acc_ref: [TILE_B, W] f32 scratch     -- resident elementwise partial sums
        lo = pl.program_id(0)
        li = pl.program_id(2)
        n_li = pl.num_programs(2)
        tb, w = yt_ref.shape

        @pl.when(li == 0)
        def _init():
            acc_ref[...] = jnp.zeros_like(acc_ref)

        # Valid-lane mask: global sequence position < doc_len expressed as a
        # single per-row lane threshold (no per-element divide/add).
        lane = lax.broadcasted_iota(jnp.int32, (tb, w), 1)
        thresh = 2 * dl_ref[...] - (lo * n_li + li) * w          # [TILE_B, 1]
        hit = jnp.logical_and(lane < thresh, yt_ref[...] == 1.0)

        logp = jnp.log(yp_ref[...].astype(jnp.float32))          # EUP slot
        acc_ref[...] += jnp.where(hit, logp, jnp.float32(0.0))   # pure VPU add

        @pl.when(li == n_li - 1)
        def _finalize():
            # Fold the wide accumulator into OUT_W lanes; fold stride is a
            # multiple of 256 (even), so class parity of each lane is preserved.
            parts = acc_ref[:, 0:out_w]
            for k in range(1, n_chunks):                         # static unroll
                parts = parts + acc_ref[:, k * out_w:(k + 1) * out_w]
            out_ref[0, :, :] = parts

    return kernel


def ce_loss_aux(y_true, y_pred, doc_len, diminish_factor=1.0, block_bytes=None):
    """y_true, y_pred: [B, L, 2]; doc_len: [B] int; returns scalar f32 loss."""
    B, L, C = y_true.shape
    assert C == 2 and y_pred.shape == (B, L, C)
    if block_bytes is None:
        block_bytes = _TARGET_TILE_BYTES

    # For large ragged L, pad to a multiple of 64 so lane-dense tiles exist.
    # Padded y_true is 0 (never a "hit") so it contributes nothing.
    if L % 64 != 0 and L > 1024:
        pad = (-L) % 64
        y_true = jnp.pad(y_true, ((0, 0), (0, pad), (0, 0)))
        y_pred = jnp.pad(y_pred, ((0, 0), (0, pad), (0, 0)), constant_values=1.0)
        L = L + pad

    tile_b, tile_l = _choose_tiles(B, L, block_bytes)
    w_tile = 2 * tile_l
    out_w = _choose_out_width(w_tile)
    n_chunks = w_tile // out_w

    n_b = B // tile_b
    n_l = L // tile_l
    # If there is only one B block, split L across two outer "parallel" chunks
    # so both TensorCores (v7x megacore) get work.
    n_lo = 2 if (n_b == 1 and n_l >= 2 and n_l % 2 == 0) else 1
    n_li = n_l // n_lo
    grid = (n_lo, n_b, n_li)

    # Free, contiguous reshapes: the class axis is interleaved on lanes
    # (even lane = class 0, odd lane = class 1); no plane materialization.
    yt = y_true.reshape(B, 2 * L)
    yp = y_pred.reshape(B, 2 * L)
    dl = jnp.asarray(doc_len, jnp.int32).reshape(B, 1)

    kernel = _make_kernel(n_chunks, out_w)

    partial = pl.pallas_call(
        kernel,
        out_shape=jax.ShapeDtypeStruct((n_lo, B, out_w), jnp.float32),
        grid=grid,
        in_specs=[
            pl.BlockSpec((tile_b, 1), lambda lo, b, li: (b, 0)),
            pl.BlockSpec((tile_b, w_tile), lambda lo, b, li: (b, lo * n_li + li)),
            pl.BlockSpec((tile_b, w_tile), lambda lo, b, li: (b, lo * n_li + li)),
        ],
        out_specs=pl.BlockSpec((1, tile_b, out_w), lambda lo, b, li: (lo, b, 0)),
        scratch_shapes=[pltpu.VMEM((tile_b, w_tile), jnp.float32)],
        compiler_params=pltpu.CompilerParams(
            dimension_semantics=("parallel", "parallel", "arbitrary"),
            vmem_limit_bytes=_vmem_limit_bytes(),
        ),
    )(dl, yt, yp)

    # Even lanes hold class-0 (negative-class) partial log-sums, odd lanes class-1.
    neg_sum = jnp.sum(partial[..., 0::2])
    pos_sum = jnp.sum(partial[..., 1::2])
    total_len = jnp.sum(dl).astype(jnp.float32)
    df = jnp.asarray(diminish_factor, jnp.float32)
    # NOTE: like the PyTorch reference, divides by sum(doc_len) with no zero guard.
    return -(pos_sum + df * neg_sum) / total_len


def _reference(y_true, y_pred, doc_len, diminish_factor=1.0):
    B, L, _ = y_true.shape
    mask = jnp.arange(L)[None, :] < doc_len[:, None]
    pos_mask = jnp.logical_and(mask, y_true[..., 1] == 1.0)
    neg_mask = jnp.logical_and(mask, y_true[..., 0] == 1.0)
    pos = -jnp.sum(jnp.where(pos_mask, jnp.log(y_pred[..., 1]), 0.0))
    neg = -jnp.sum(jnp.where(neg_mask, jnp.log(y_pred[..., 0]), 0.0)) * diminish_factor
    return (pos + neg) / jnp.sum(doc_len)


def _make_inputs(key, B, L):
    k1, k2, k3 = jax.random.split(key, 3)
    logits = jax.random.normal(k1, (B, L, 2), dtype=jnp.float32)
    y_pred = jax.nn.softmax(logits, axis=-1)                    # probs in (0,1)
    labels = jax.random.bernoulli(k2, 0.5, (B, L)).astype(jnp.int32)
    y_true = jax.nn.one_hot(labels, 2, dtype=jnp.float32)       # one-hot [B, L, 2]
    doc_len = jax.random.randint(k3, (B,), minval=1, maxval=L + 1, dtype=jnp.int32)
    return y_true, y_pred, doc_len


if __name__ == "__main__":
    key = jax.random.PRNGKey(0)

    # Small case consistent with the module (batch=2, seq=8), fixed doc_len.
    y_true, y_pred, _ = _make_inputs(key, 2, 8)
    doc_len = jnp.array([6, 8], dtype=jnp.int32)
    diminish_factor = 0.5
    loss = jax.block_until_ready(ce_loss_aux(y_true, y_pred, doc_len, diminish_factor))
    ref = _reference(y_true, y_pred, doc_len, diminish_factor)
    assert jnp.allclose(loss, ref, rtol=1e-5, atol=1e-6), (loss, ref)

    # Larger case: exercises the narrow-output fold (16 chunks), single L step.
    y_true2, y_pred2, doc_len2 = _make_inputs(jax.random.PRNGKey(1), 8, 2048)
    loss2 = jax.block_until_ready(ce_loss_aux(y_true2, y_pred2, doc_len2, 0.25))
    ref2 = _reference(y_true2, y_pred2, doc_len2, 0.25)
    assert jnp.allclose(loss2, ref2, rtol=1e-4, atol=1e-5), (loss2, ref2)

    # Same data with a reduced tile budget: exercises the multi-step resident
    # accumulator (arbitrary L axis) and the 2-way parallel L split (grid (2,1,2)).
    loss3 = jax.block_until_ready(
        ce_loss_aux(y_true2, y_pred2, doc_len2, 0.25, block_bytes=32 * 1024))
    assert jnp.allclose(loss3, ref2, rtol=1e-4, atol=1e-5), (loss3, ref2)

    print("KERNEL_OK")
</pallas_src>

<mosaic_0001>
module attributes {stable_mosaic.version = 11 : i64} {
  func.func @kernel(%arg0: i32, %arg1: i32, %arg2: i32, %arg3: memref<2x1xi32, #tpu.memory_space<vmem>>, %arg4: memref<2x16xf32, #tpu.memory_space<vmem>>, %arg5: memref<2x16xf32, #tpu.memory_space<vmem>>, %arg6: memref<1x2x16xf32, #tpu.memory_space<vmem>>, %arg7: memref<2x16xf32, #tpu.memory_space<vmem>>) attributes {dimension_semantics = [#tpu.dimension_semantics<parallel>, #tpu.dimension_semantics<parallel>, #tpu.dimension_semantics<arbitrary>], iteration_bounds = array<i64: 1, 1, 1>, scalar_prefetch = 0 : i64, scratch_operands = 1 : i64, tpu.core_type = #tpu.core_type<tc>, window_params = [{transform_indices = @transform_0, window_bounds = array<i64: 2, 1>}, {transform_indices = @transform_1, window_bounds = array<i64: 2, 16>}, {transform_indices = @transform_2, window_bounds = array<i64: 2, 16>}, {transform_indices = @transform_3, window_bounds = array<i64: 1, 2, 16>}]} {
    %c0_i32 = arith.constant 0 : i32
    %0 = arith.cmpi eq, %arg2, %c0_i32 : i32
    %1 = arith.extui %0 : i1 to i32
    %c0_i32_0 = arith.constant 0 : i32
    %2 = arith.cmpi ne, %1, %c0_i32_0 : i32
    scf.if %2 {
      %cst_13 = arith.constant 0.000000e+00 : f32
      %28 = vector.broadcast %cst_13 : f32 to vector<2x16xf32>
      %c0_14 = arith.constant 0 : index
      %c0_15 = arith.constant 0 : index
      %29 = vector.load %arg7[%c0_14, %c0_15] : memref<2x16xf32, #tpu.memory_space<vmem>>, vector<2x16xf32>
      tpu.vector_store %arg7[%c0_14, %c0_15], %28 {strides = array<i32>} : memref<2x16xf32, #tpu.memory_space<vmem>>, vector<2x16xf32>,
    } else {
    }
    %3 = tpu.iota {dimensions = array<i32: 1>} : vector<2x16xi32>
    %c0 = arith.constant 0 : index
    %c0_1 = arith.constant 0 : index
    %4 = vector.load %arg3[%c0, %c0_1] : memref<2x1xi32, #tpu.memory_space<vmem>>, vector<2x1xi32>
    %c2_i32 = arith.constant 2 : i32
    %5 = vector.broadcast %c2_i32 : i32 to vector<2x1xi32>
    %6 = arith.muli %5, %4 : vector<2x1xi32>
    %c1_i32 = arith.constant 1 : i32
    %7 = arith.muli %arg0, %c1_i32 : i32
    %8 = arith.addi %7, %arg2 : i32
    %c16_i32 = arith.constant 16 : i32
    %9 = arith.muli %8, %c16_i32 : i32
    %10 = vector.broadcast %9 : i32 to vector<2x1xi32>
    %11 = arith.subi %6, %10 : vector<2x1xi32>
    %12 = vector.broadcast %11 : vector<2x1xi32> to vector<2x16xi32>
    %13 = arith.cmpi slt, %3, %12 : vector<2x16xi32>
    %c0_2 = arith.constant 0 : index
    %c0_3 = arith.constant 0 : index
    %14 = vector.load %arg4[%c0_2, %c0_3] : memref<2x16xf32, #tpu.memory_space<vmem>>, vector<2x16xf32>
    %cst = arith.constant 1.000000e+00 : f32
    %15 = vector.broadcast %cst : f32 to vector<2x16xf32>
    %16 = arith.cmpf oeq, %14, %15 : vector<2x16xf32>
    %17 = arith.andi %13, %16 : vector<2x16xi1>
    %c0_4 = arith.constant 0 : index
    %c0_5 = arith.constant 0 : index
    %18 = vector.load %arg5[%c0_4, %c0_5] : memref<2x16xf32, #tpu.memory_space<vmem>>, vector<2x16xf32>
    %19 = math.log %18 : vector<2x16xf32>
    %c0_6 = arith.constant 0 : index
    %c0_7 = arith.constant 0 : index
    %20 = vector.load %arg7[%c0_6, %c0_7] : memref<2x16xf32, #tpu.memory_space<vmem>>, vector<2x16xf32>
    %cst_8 = arith.constant 0.000000e+00 : f32
    %21 = vector.broadcast %cst_8 : f32 to vector<2x16xf32>
    %22 = arith.select %17, %19, %21 : vector<2x16xi1>, vector<2x16xf32>
    %23 = arith.addf %20, %22 : vector<2x16xf32>
    %c0_9 = arith.constant 0 : index
    %c0_10 = arith.constant 0 : index
    %24 = vector.load %arg7[%c0_9, %c0_10] : memref<2x16xf32, #tpu.memory_space<vmem>>, vector<2x16xf32>
    tpu.vector_store %arg7[%c0_9, %c0_10], %23 {strides = array<i32>} : memref<2x16xf32, #tpu.memory_space<vmem>>, vector<2x16xf32>,
    %c0_i32_11 = arith.constant 0 : i32
    %25 = arith.cmpi eq, %arg2, %c0_i32_11 : i32
    %26 = arith.extui %25 : i1 to i32
    %c0_i32_12 = arith.constant 0 : i32
    %27 = arith.cmpi ne, %26, %c0_i32_12 : i32
    scf.if %27 {
      %c0_13 = arith.constant 0 : index
      %c0_14 = arith.constant 0 : index
      %28 = vector.load %arg7[%c0_13, %c0_14] : memref<2x16xf32, #tpu.memory_space<vmem>>, vector<2x16xf32>
      %c0_15 = arith.constant 0 : index
      %c0_16 = arith.constant 0 : index
      %c0_17 = arith.constant 0 : index
      %29 = vector.load %arg6[%c0_15, %c0_16, %c0_17] : memref<1x2x16xf32, #tpu.memory_space<vmem>>, vector<1x2x16xf32>
      %30 = vector.shape_cast %29 : vector<1x2x16xf32> to vector<2x16xf32>
      %31 = vector.shape_cast %28 : vector<2x16xf32> to vector<1x2x16xf32>
      tpu.vector_store %arg6[%c0_15, %c0_16, %c0_17], %31 {strides = array<i32>} : memref<1x2x16xf32, #tpu.memory_space<vmem>>, vector<1x2x16xf32>,
    } else {
    }
    return
  }
  func.func @transform_0(%arg0: i32, %arg1: i32, %arg2: i32) -> (i32, i32) {
    %c0_i32 = arith.constant 0 : i32
    %c0_i32_0 = arith.constant 0 : i32
    return %arg1, %c0_i32 : i32, i32
  }
  func.func @transform_1(%arg0: i32, %arg1: i32, %arg2: i32) -> (i32, i32) {
    %c1_i32 = arith.constant 1 : i32
    %0 = arith.muli %arg0, %c1_i32 : i32
    %1 = arith.addi %0, %arg2 : i32
    %c0_i32 = arith.constant 0 : i32
    return %arg1, %1 : i32, i32
  }
  func.func @transform_2(%arg0: i32, %arg1: i32, %arg2: i32) -> (i32, i32) {
    %c1_i32 = arith.constant 1 : i32
    %0 = arith.muli %arg0, %c1_i32 : i32
    %1 = arith.addi %0, %arg2 : i32
    %c0_i32 = arith.constant 0 : i32
    return %arg1, %1 : i32, i32
  }
  func.func @transform_3(%arg0: i32, %arg1: i32, %arg2: i32) -> (i32, i32, i32) {
    %c0_i32 = arith.constant 0 : i32
    %c0_i32_0 = arith.constant 0 : i32
    return %arg0, %arg1, %c0_i32 : i32, i32, i32
  }
}

</mosaic_0001>

<llo_original>
// kernel: tpu_custom_call.1
$region0: #{tpu_custom_call.1}
  #allocation0 [shape = 'u32[]', space=smem, size = 0x4, offset = 0x4, fixed_abs, tag = 'smem constant byte address 0x4 - core index']
  #allocation1 [shape = 'u32[144,128]{1,0:T(1,128)}', space=vmem, size = 0x12000, scoped, tag = 'internal scratch']
  #allocation2 [shape = 'f32[2,16]{1,0:T(2,128)}', space=vmem, size = 0x400, scoped, tag = 'scratch operand']
  %s0 = inlined_call_operand.vmem [shape: s32[2,1], index: 0, kind: input, shape index: {}]
  %s1 = inlined_call_operand.vmem [shape: f32[2,16], index: 1, kind: input, shape index: {}]
  %s2 = inlined_call_operand.vmem [shape: f32[2,16], index: 2, kind: input, shape index: {}]
  %s3 = inlined_call_operand.hbm [shape: f32[1,2,16], index: 3, kind: output, shape index: {}]
  %s4 = sld [smem:[#allocation0]]
  $region30: #{tpu_custom_call.1} parent=0
    _
  %s6 = ssub.s32 1, %s4
  %s7 = scalar_select 0, %s6, %s4
  $region1: #{tpu_custom_call.1} parent=0
    #allocation3 [shape = 'u8[1024]{0}', space=vmem, size = 0x400, scoped, tag = 'output window, operand 0, single buffered']
    #allocation4 [shape = 's32[1]{0}', space=sflag, size = 0x4, scoped, tag = 'scoped memory for tpu_custom_call.1']
    %8 = vsyncpa [#allocation4], 0
    // Predicated region
    $region2: #{tpu_custom_call.1} parent=1 // pred_check
      _
    $region3: #{tpu_custom_call.1} parent=1 // pred_check_branch
      %10 = sbr.rel (0) target = $region5
    $region4: #{tpu_custom_call.1} parent=1 // pred_region
      _
    $region5: #{tpu_custom_call.1} parent=1 // pred_fallthru
      _
    // Predicated region
    $region6: #{tpu_custom_call.1} parent=1 // pred_check
      _
    $region7: #{tpu_custom_call.1} parent=1 // pred_check_branch
      %12 = sbr.rel (0) target = $region9
    $region8: #{tpu_custom_call.1} parent=1 // pred_region
      %s13 = sadd.s32 0, 0
      %p14 = scmp.lt.s32.totalorder %s13, 0
      %s15 = scalar_select %p14, %s13, 0
      %s16 = smul.addr %s15, 2
      %s17 = scalar_lea.vmem %s1, %s16
      %s18 = sadd.s32 0, 0
    $region9: #{tpu_custom_call.1} parent=1 // pred_fallthru
      _
    // Predicated region
    $region10: #{tpu_custom_call.1} parent=1 // pred_check
      _
    $region11: #{tpu_custom_call.1} parent=1 // pred_check_branch
      %20 = sbr.rel (0) target = $region13
    $region12: #{tpu_custom_call.1} parent=1 // pred_region
      %s21 = sadd.s32 0, 0
      %p22 = scmp.lt.s32.totalorder %s21, 0
      %s23 = scalar_select %p22, %s21, 0
      %s24 = smul.addr %s23, 2
      %s25 = scalar_lea.vmem %s2, %s24
      %s26 = sadd.s32 0, 0
    $region13: #{tpu_custom_call.1} parent=1 // pred_fallthru
      _
    %s27 = sadd.s32 0, 0
    %p28 = scmp.lt.s32.totalorder %s27, 0
    %s29 = scalar_select %p28, %s27, 0
    %s30 = smul.addr %s29, 2
    %s31 = scalar_lea.vmem %s1, %s30
    %s32 = sadd.s32 0, 0
    %p33 = scmp.lt.s32.totalorder %s32, 0
    %s34 = scalar_select %p33, %s32, 0
    %s35 = smul.addr %s34, 2
    %s36 = scalar_lea.vmem %s2, %s35
    %s37 = sadd.s32 0, 0
    %p38 = scmp.lt.s32.totalorder %s37, 0
    %s39 = scalar_select %p38, %s37, 0
    %s40 = smul.addr %s39, 2
    %s41 = scalar_lea.vmem %s1, %s40
    %s42 = sadd.s32 0, 0
    %s43 = sadd.s32 0, 0
    %p44 = scmp.lt.s32.totalorder %s43, 0
    %s45 = scalar_select %p44, %s43, 0
    %s46 = smul.addr %s45, 2
    %s47 = scalar_lea.vmem %s2, %s46
    %s48 = sadd.s32 0, 0
    %p49 = scmp.eq.s32.totalorder 0, 0
    // Predicated region
    $region14: #{tpu_custom_call.1} parent=1 // pred_check
      %p50 = pneg %p49
    $region15: #{tpu_custom_call.1} parent=1 // pred_check_branch
      %52 = sbr.rel (%p50) target = $region17
    $region16: #{tpu_custom_call.1} parent=1 // pred_region
      %vm53 = vcmask 123904
      %54 = vst.msk [vmem:[#allocation2] sm:$0x3] %vm53, 0.0
    $region17: #{tpu_custom_call.1} parent=1 // pred_fallthru
      _
    %v55 = vlaneseq
    %v56 = vand.u32 %v55, 127
    %v57 = vld [vmem:[%s0] sm:$0x3]
    %v58 = vmul.u32 %v57, 2
    %s59 = sadd.s32 0, 0
    %s60 = smul.u32 %s59, 16
    %v61 = vstv %s60
    %v62 = vsub.s32 %v58, %v61
    %63 = vset.pattern.permute.xlu0 0
    %64 = vperm.xlu0 %63, %v62
    %v65 = vpop.permute.xlu0 %64
    %vm66 = vcmp.lt.s32.totalorder %v56, %v65
    %v67 = vld [vmem:[%s41] sm:$0x3]
    %vm68 = vcmp.eq.f32.partialorder %v67, 1.0
    %vm69 = vmand %vm66, %vm68
    %v70 = vld [vmem:[%s47] sm:$0x3]
    %v71 = vlog2.pop %v70
    %v72 = vmul.f32 %v71, 0.6931472
    %v73 = vld [vmem:[#allocation2] sm:$0x3]
    %v74 = vsel %vm69, %v72, 0.0
    %v75 = vadd.f32 %v73, %v74
    %vm76 = vcmask 123904
    %77 = vst.msk [vmem:[#allocation2] sm:$0x3] %vm76, %v75
    // Predicated region
    $region18: #{tpu_custom_call.1} parent=1 // pred_check
      %p78 = pneg %p49
    $region19: #{tpu_custom_call.1} parent=1 // pred_check_branch
      %80 = sbr.rel (%p78) target = $region21
    $region20: #{tpu_custom_call.1} parent=1 // pred_region
      %v81 = vld [vmem:[#allocation2] sm:$0x3]
      %82 = vst.msk [vmem:[#allocation3] sm:$0x3] %vm76, %v81
    $region21: #{tpu_custom_call.1} parent=1 // pred_fallthru
      _
    // Predicated region
    $region22: #{tpu_custom_call.1} parent=1 // pred_check
      _
    $region23: #{tpu_custom_call.1} parent=1 // pred_check_branch
      %84 = sbr.rel (0) target = $region25
    $region24: #{tpu_custom_call.1} parent=1 // pred_region
      %s86 = ssub.s32 32, 32
      %87 = vsyncadd [#allocation4], %s86
      %s89 = sshll.u32 [#allocation3], 4
      %s90 = int_to_ptr.vmem [resolvable:$true] %s89
      %92 = dma.vmem_to_hbm [thread:$0]  %s90, 32, %s3, [#allocation4]
    $region25: #{tpu_custom_call.1} parent=1 // pred_fallthru
      _
    // Predicated region
    $region26: #{tpu_custom_call.1} parent=1 // pred_check
      _
    $region27: #{tpu_custom_call.1} parent=1 // pred_check_branch
      %94 = sbr.rel (0) target = $region29
    $region28: #{tpu_custom_call.1} parent=1 // pred_region
      %95 = dma.done [#allocation4], 32
    $region29: #{tpu_custom_call.1} parent=1 // pred_fallthru
      _
    %96 = vsyncpa [#allocation4], 1

</llo_original>
